<compile_context>
chip_gen: v7x
topology: tpu7x:2x2x1
jax: 0.10.0
libtpu: 0.0.40
codegen_flags: <defaults>
</compile_context>

<pallas_src>
import functools
import math

import jax
import jax.numpy as jnp
from jax.experimental import pallas as pl
from jax.experimental.pallas import tpu as pltpu

_HALF_LOG_2PI = 0.5 * math.log(2.0 * math.pi)


def _round_up(a, b):
    return ((a + b - 1) // b) * b


def _pad_axis(a, axis, target):
    pad = target - a.shape[axis]
    if pad == 0:
        return a
    widths = [(0, 0)] * a.ndim
    widths[axis] = (0, pad)
    return jnp.pad(a, widths)


def _device_kind():
    try:
        return jax.devices()[0].device_kind.lower()
    except Exception:
        return ""


def _bf16_eup_ok():
    # v6e / v7x EUP runs bf16 exp at ~2x f32 throughput; v2-v5 do not.
    dk = _device_kind()
    return not any(g in dk for g in ("v2", "v3", "v4", "v5"))


def _num_tensorcores():
    # v7x has 2 TensorCores per chip; v5e / v6e have 1.
    dk = _device_kind()
    return 2 if ("v7" in dk or "7x" in dk) else 1


# ---------------- Pallas Gram-matrix kernels (prediction-path / full K) ------

def _se_gram_kernel(scal_ref, xi_ref, xi_sq_ref, xjT_ref, xj_sq_ref, k_ref,
                    *, bf16_exp):
    """SE: K[i,j] = sigma1^2 * exp(-0.5*||xi-xj||^2 / l1^2).

    scal = [sigma1^2, -0.5/l1^2]  (scalar math hoisted to the wrapper).
    xjT arrives pre-transposed as (D, tn) so the column operand is lane-dense,
    and both squared-norm vectors are precomputed in XLA (O(N), once)."""
    s2 = scal_ref[0]
    c = scal_ref[1]
    xi = xi_ref[...]                                   # (tm, D)
    xjT = xjT_ref[...]                                 # (D, tn) lane-dense
    xi_sq = xi_sq_ref[...]                             # (tm, 1)
    xj_sq = xj_sq_ref[...]                             # (1, tn)
    cross = jax.lax.dot_general(                       # MXU: (tm,D)x(D,tn)
        xi, xjT, (((1,), (0,)), ((), ())), preferred_element_type=jnp.float32)
    # NOTE: the norm expansion cancels for near-identical points (clamped at 0);
    # near-diagonal entries can differ ~1e-6 rel from the direct-difference form.
    d2 = jnp.maximum(xi_sq + xj_sq - 2.0 * cross, 0.0)
    e = d2 * c
    if bf16_exp:
        # v6e/v7x: bf16 EUP exp ~2x throughput; worst-case ~1e-2 relative error.
        k_ref[...] = s2 * jnp.exp(e.astype(jnp.bfloat16)).astype(jnp.float32)
    else:
        k_ref[...] = s2 * jnp.exp(e)


def _wn_gram_mxu_kernel(scal_ref, xi_ref, xi_sq_ref, xjT_ref, xj_sq_ref, k_ref):
    """WN (fast path): equality via squared distance on the MXU.

    K[i,j] = sigma0^2 * [ ||xi-xj||^2 <= eps*(||xi||^2+||xj||^2) ].
    ~4 VPU ops/element plus an otherwise-idle MXU push instead of ~2*D VPU ops
    and D lane broadcasts -> HBM-writeback bound.  Semantics: relative distance
    threshold instead of exact per-dim equality (use wn_exact=True for exact).
    scal = [sigma0^2, rel_eps]."""
    s2 = scal_ref[0]
    eps = scal_ref[1]
    xi = xi_ref[...]                                   # (tm, D)
    xjT = xjT_ref[...]                                 # (D, tn)
    sum_sq = xi_sq_ref[...] + xj_sq_ref[...]           # (tm, tn) via broadcast
    cross = jax.lax.dot_general(
        xi, xjT, (((1,), (0,)), ((), ())), preferred_element_type=jnp.float32)
    d2 = sum_sq - 2.0 * cross
    k_ref[...] = jnp.where(d2 <= eps * sum_sq, s2, jnp.float32(0.0))


def _wn_gram_exact_kernel(scal_ref, xi_ref, xjT_ref, k_ref):
    """WN (exact path): per-dimension exact equality AND-ed on the VPU.
    Matches the PyTorch `norm == 0` semantics exactly; VPU/XLU bound."""
    s2 = scal_ref[0]
    xi = xi_ref[...]                                   # (tm, D)
    xjT = xjT_ref[...]                                 # (D, tn) lane-dense
    eq = xi[:, 0:1] == xjT[0:1, :]                     # (tm, tn) bool
    for d in range(1, xi.shape[1]):                    # D is small and static
        eq = jnp.logical_and(eq, xi[:, d:d + 1] == xjT[d:d + 1, :])
    k_ref[...] = jnp.where(eq, s2, jnp.float32(0.0))


def _lin_gram_kernel(scal_ref, xi_ref, xjT_ref, k_ref):
    """LIN: K = c1^2 + a1 * outer(x - c0, x - c0)   (requires D == 1).
    Rank-1 outer product as a VPU broadcast multiply.  scal = [c0, c1^2, a1]."""
    c0 = scal_ref[0]
    c1sq = scal_ref[1]
    a1 = scal_ref[2]
    vi = xi_ref[...] - c0                              # (tm, 1)
    vj = xjT_ref[...] - c0                             # (1, tn) pre-transposed
    k_ref[...] = c1sq + a1 * (vi * vj)


def gram_matrix(x, params, ktype, tm=None, tn=None,
                use_bf16_exp=None, wn_exact=False, wn_rel_eps=1e-5):
    """Full K = kernel(x, x) on a 2-D (row-tile, col-tile) pallas_call grid.

    Only needed by prediction()-style code paths; forward() uses the O(N)
    closed-form diagonal (see gp_forward below)."""
    N, D = x.shape
    if ktype == 'LIN' and D != 1:
        raise ValueError("LIN kernel (torch.ger on x.view(-1)) requires D == 1")

    dk = _device_kind()
    if tm is None:
        tm = 256
    if tn is None:
        # v5e is writeback-bound (~820 GB/s, one vst slot): bigger tiles ->
        # fewer grid steps; v6e/v7x keep 2048 lanes.
        tn = 4096 if "v5" in dk else 2048
    tm = _round_up(min(tm, _round_up(N, 8)), 8)
    tn = _round_up(min(tn, _round_up(N, 128)), 128)
    # v7x has 2 TensorCores: ensure the 'parallel' column axis has >=2 tiles
    # for mid-sized N so both cores get work.
    if _num_tensorcores() >= 2 and _round_up(N, tn) // tn < 2 and N > 128:
        tn = _round_up((N + 1) // 2, 128)
    np_r = _round_up(N, tm)
    np_c = _round_up(N, tn)
    grid = (np_r // tm, np_c // tn)

    x = x.astype(jnp.float32)
    params = params.astype(jnp.float32)
    xr = _pad_axis(x, 0, np_r)                         # row operand  (np_r, D)
    xc = _pad_axis(x, 0, np_c)                         # col operand  (np_c, D)
    xcT = xc.T                                         # (D, np_c) lane-dense

    smem_spec = pl.BlockSpec(memory_space=pltpu.MemorySpace.SMEM)
    xi_spec = pl.BlockSpec((tm, D), lambda i, j: (i, 0))
    xi_sq_spec = pl.BlockSpec((tm, 1), lambda i, j: (i, 0))
    xjT_spec = pl.BlockSpec((D, tn), lambda i, j: (0, j))
    xj_sq_spec = pl.BlockSpec((1, tn), lambda i, j: (0, j))
    out_spec = pl.BlockSpec((tm, tn), lambda i, j: (i, j))
    out_shape = jax.ShapeDtypeStruct((np_r, np_c), jnp.float32)
    cparams = pltpu.CompilerParams(
        dimension_semantics=("parallel", "parallel"),
        # ~2*(tm*tn*4B) out slab + tiny inputs; well under v7x's 64 MiB physical.
        vmem_limit_bytes=24 * 1024 * 1024)

    if ktype == 'SE':
        if use_bf16_exp is None:
            use_bf16_exp = _bf16_eup_ok()
        scal = jnp.stack([params[0] * params[0],
                          -0.5 / (params[1] * params[1])])
        xi_sq = jnp.sum(xr * xr, axis=-1, keepdims=True)        # (np_r, 1)
        xj_sq = jnp.sum(xc * xc, axis=-1)[None, :]              # (1, np_c)
        k = pl.pallas_call(
            functools.partial(_se_gram_kernel, bf16_exp=bool(use_bf16_exp)),
            out_shape=out_shape, grid=grid,
            in_specs=[smem_spec, xi_spec, xi_sq_spec, xjT_spec, xj_sq_spec],
            out_specs=out_spec, compiler_params=cparams,
        )(scal, xr, xi_sq, xcT, xj_sq)
    elif ktype == 'WN':
        s2 = params[0] * params[0]
        if wn_exact:
            k = pl.pallas_call(
                _wn_gram_exact_kernel,
                out_shape=out_shape, grid=grid,
                in_specs=[smem_spec, xi_spec, xjT_spec],
                out_specs=out_spec, compiler_params=cparams,
            )(jnp.stack([s2]), xr, xcT)
        else:
            scal = jnp.stack([s2, jnp.float32(wn_rel_eps)])
            xi_sq = jnp.sum(xr * xr, axis=-1, keepdims=True)
            xj_sq = jnp.sum(xc * xc, axis=-1)[None, :]
            k = pl.pallas_call(
                _wn_gram_mxu_kernel,
                out_shape=out_shape, grid=grid,
                in_specs=[smem_spec, xi_spec, xi_sq_spec, xjT_spec, xj_sq_spec],
                out_specs=out_spec, compiler_params=cparams,
            )(scal, xr, xi_sq, xcT, xj_sq)
    elif ktype == 'LIN':
        scal = jnp.stack([params[0], params[1] * params[1], params[2]])
        k = pl.pallas_call(
            _lin_gram_kernel,
            out_shape=out_shape, grid=grid,
            in_specs=[smem_spec, xi_spec, xjT_spec],   # (tm,1) and (1,tn) for D==1
            out_specs=out_spec, compiler_params=cparams,
        )(scal, xr, xcT)
    else:
        raise ValueError(ktype)

    return k[:N, :N]


# ---------------- O(N) forward pass: fused diag(K) + log-prob + mean ---------

def _gp_loss_const_kernel(scal_ref, n_ref, y_ref, loss_ref, acc_ref):
    """SE / WN: diag(K) is constant -> one scalar scale.
    scal = [coef, const, 1/N] with coef = -0.5/scale^2,
    const = log(scale)+0.5*log(2*pi).  Partial sums accumulate in acc_ref and
    the (negated) mean is finalized on the last grid step."""
    i = pl.program_id(0)

    @pl.when(i == 0)
    def _():
        acc_ref[...] = jnp.zeros_like(acc_ref)

    coef = scal_ref[0]
    const = scal_ref[1]
    inv_n = scal_ref[2]
    n = n_ref[0]
    rows, lanes = y_ref.shape
    row = jax.lax.broadcasted_iota(jnp.int32, (rows, lanes), 0)
    lane = jax.lax.broadcasted_iota(jnp.int32, (rows, lanes), 1)
    idx = (i * rows + row) * lanes + lane              # global flat index
    y = y_ref[...]
    logp = y * y * coef - const
    acc_ref[...] += jnp.sum(jnp.where(idx < n, logp, 0.0))

    @pl.when(i == pl.num_programs(0) - 1)
    def _():
        loss_ref[...] = -(acc_ref[...] * inv_n)


def _gp_loss_lin_kernel(scal_ref, n_ref, x_ref, y_ref, loss_ref, acc_ref):
    """LIN: diag(K)[i] = c1^2 + a1*(x_i - c0)^2 depends on x -> fused here.
    scal = [c0, c1^2, a1, error, 1/N]."""
    i = pl.program_id(0)

    @pl.when(i == 0)
    def _():
        acc_ref[...] = jnp.zeros_like(acc_ref)

    c0 = scal_ref[0]
    c1sq = scal_ref[1]
    a1 = scal_ref[2]
    err = scal_ref[3]
    inv_n = scal_ref[4]
    n = n_ref[0]
    rows, lanes = y_ref.shape
    row = jax.lax.broadcasted_iota(jnp.int32, (rows, lanes), 0)
    lane = jax.lax.broadcasted_iota(jnp.int32, (rows, lanes), 1)
    idx = (i * rows + row) * lanes + lane

    v = x_ref[...] - c0
    scale = c1sq + a1 * (v * v) + err                  # diag(Kxx + err*I)
    inv_s = pl.reciprocal(scale, approx=False)         # EUP path, exact
    y = y_ref[...]
    logp = -(y * y) * (0.5 * inv_s * inv_s) - jnp.log(scale) - _HALF_LOG_2PI
    acc_ref[...] += jnp.sum(jnp.where(idx < n, logp, 0.0))

    @pl.when(i == pl.num_programs(0) - 1)
    def _():
        loss_ref[...] = -(acc_ref[...] * inv_n)


def gp_forward(x, y, params, ktype, error=1.0):
    """loss = -Normal(0, diag(Kxx + error*I)).log_prob(y.view(-1)).mean()

    forward() only uses diag(Kxx), which is closed-form -> a single O(N)
    Pallas reduction over (rows, 128) lane/sublane-dense tiles; the log-prob
    and the mean are fused, so nothing O(N) is written back to HBM.
    (For SE/WN this is const - coef*mean(y^2); the fused Pallas reduction keeps
    one code path for all three kernel types.)"""
    N, D = x.shape
    if ktype == 'LIN' and D != 1:
        raise ValueError("LIN kernel requires D == 1")

    lanes = 128
    tile_elems = min(128 * 1024, _round_up(N, 1024))   # per-step tile (<=512 KiB)
    np_ = _round_up(N, tile_elems)
    rows_total = np_ // lanes
    rows_tile = tile_elems // lanes
    grid = (np_ // tile_elems,)

    yf = _pad_axis(y.reshape(-1).astype(jnp.float32), 0, np_)
    yf = yf.reshape(rows_total, lanes)                 # lane+sublane dense

    smem_spec = pl.BlockSpec(memory_space=pltpu.MemorySpace.SMEM)
    tile_spec = pl.BlockSpec((rows_tile, lanes), lambda i: (i, 0))
    out_spec = pl.BlockSpec((1, 1), lambda i: (0, 0))
    out_shape = jax.ShapeDtypeStruct((1, 1), jnp.float32)
    cparams = pltpu.CompilerParams(dimension_semantics=("arbitrary",))
    scratch = [pltpu.VMEM((1, 1), jnp.float32)]
    nvalid = jnp.array([N], dtype=jnp.int32)
    params = params.astype(jnp.float32)
    inv_n = jnp.float32(1.0 / N)

    if ktype in ('SE', 'WN'):
        # Closed-form diagonal: SE -> sigma1^2, WN -> sigma0^2 (params[0]).
        scale = params[0] * params[0] + jnp.float32(error)
        coef = -0.5 / (scale * scale)
        const = jnp.log(scale) + _HALF_LOG_2PI
        scal = jnp.stack([coef, const, inv_n])
        loss = pl.pallas_call(
            _gp_loss_const_kernel,
            out_shape=out_shape, grid=grid,
            in_specs=[smem_spec, smem_spec, tile_spec],
            out_specs=out_spec, scratch_shapes=scratch,
            compiler_params=cparams,
        )(scal, nvalid, yf)
    elif ktype == 'LIN':
        xf = _pad_axis(x.reshape(-1).astype(jnp.float32), 0, np_)
        xf = xf.reshape(rows_total, lanes)
        scal = jnp.stack([params[0], params[1] * params[1], params[2],
                          jnp.float32(error), inv_n])
        loss = pl.pallas_call(
            _gp_loss_lin_kernel,
            out_shape=out_shape, grid=grid,
            in_specs=[smem_spec, smem_spec, tile_spec, tile_spec],
            out_specs=out_spec, scratch_shapes=scratch,
            compiler_params=cparams,
        )(scal, nvalid, xf, yf)
    else:
        raise ValueError(ktype)

    return loss[0, 0]
    # TODO(synk): prediction() (torch.cholesky / cholesky_inverse and its PSD
    # retry loop) is not part of forward() and is not ported; gram_matrix()
    # above provides the Kxx / Kxs blocks it would need.


# ---------------- pure-JAX reference (mirrors the PyTorch code) --------------

def _gram_ref(x, p, ktype):
    if ktype == 'SE':
        d2 = jnp.sum((x[:, None, :] - x[None, :, :]) ** 2, axis=-1)
        return p['sigma1'] ** 2 * jnp.exp(-0.5 * d2 / p['l1'] ** 2)
    if ktype == 'WN':
        d2 = jnp.sum((x[:, None, :] - x[None, :, :]) ** 2, axis=-1)
        return p['sigma0'] ** 2 * (d2 == 0.0).astype(jnp.float32)
    if ktype == 'LIN':
        v = x.reshape(-1) - p['constant0']
        return p['constant1'] ** 2 + p['coeff1'] * jnp.outer(v, v)
    raise ValueError(ktype)


def gp_forward_ref(x, y, p, ktype, error=1.0):
    kxx = _gram_ref(x, p, ktype)
    scale = jnp.diag(kxx + error * jnp.eye(x.shape[0], dtype=x.dtype))
    yf = y.reshape(-1)
    log_prob = (-(yf ** 2) / (2.0 * scale ** 2)
                - jnp.log(scale) - _HALF_LOG_2PI)
    return -jnp.mean(log_prob)


if __name__ == "__main__":
    # nn.Parameter(torch.Tensor([1])) -> every hyperparameter starts at 1.0.
    p = dict(sigma0=1.0, constant0=1.0, constant1=1.0, coeff1=1.0,
             l1=1.0, sigma1=1.0)
    error = 1.0                                        # self.error = torch.Tensor([1])

    key = jax.random.PRNGKey(0)
    kx, ky, kx1 = jax.random.split(key, 3)
    N, D = 128, 8
    x = jax.random.normal(kx, (N, D), dtype=jnp.float32)    # SE / WN inputs
    y = jax.random.normal(ky, (N, 1), dtype=jnp.float32)
    x1 = jax.random.normal(kx1, (N, 1), dtype=jnp.float32)  # 1-D inputs for LIN

    params_by_ktype = {
        'SE': jnp.array([p['sigma1'], p['l1']], dtype=jnp.float32),
        'WN': jnp.array([p['sigma0']], dtype=jnp.float32),
        'LIN': jnp.array([p['constant0'], p['constant1'], p['coeff1']],
                         dtype=jnp.float32),
    }

    for ktype, xin in (('SE', x), ('WN', x), ('LIN', x1)):
        params = params_by_ktype[ktype]

        # forward() — fused O(N) diag + log-prob + mean, one Pallas reduction.
        loss = jax.block_until_ready(gp_forward(xin, y, params, ktype, error=error))
        ref_loss = gp_forward_ref(xin, y, p, ktype, error=error)
        assert jnp.allclose(loss, ref_loss, rtol=1e-5, atol=1e-5), \
            (ktype, float(loss), float(ref_loss))

        ref_k = _gram_ref(xin, p, ktype)

        # Reference-exact gram path (f32 exp, exact per-dim WN equality).
        k_exact = jax.block_until_ready(
            gram_matrix(xin, params, ktype, use_bf16_exp=False, wn_exact=True))
        assert jnp.allclose(k_exact, ref_k, rtol=1e-4, atol=1e-5), \
            (ktype, "exact gram mismatch")

        # Performance-default gram path (bf16 exp on v6e/v7x, MXU-d2 WN).
        k_fast = jax.block_until_ready(gram_matrix(xin, params, ktype))
        if ktype == 'SE' and _bf16_eup_ok():
            rtol, atol = 2e-2, 1e-3                    # bf16-exp tolerance
        else:
            rtol, atol = 1e-4, 1e-5
        assert jnp.allclose(k_fast, ref_k, rtol=rtol, atol=atol), \
            (ktype, "fast gram mismatch")

    print("KERNEL_OK")
</pallas_src>

<mosaic_0001>
module attributes {stable_mosaic.version = 11 : i64} {
  func.func @_gp_loss_const_kernel(%arg0: i32, %arg1: memref<3xf32, #tpu.memory_space<smem>>, %arg2: memref<1xi32, #tpu.memory_space<smem>>, %arg3: memref<8x128xf32, #tpu.memory_space<vmem>>, %arg4: memref<1x1xf32, #tpu.memory_space<vmem>>, %arg5: memref<1x1xf32, #tpu.memory_space<vmem>>) attributes {dimension_semantics = [#tpu.dimension_semantics<arbitrary>], iteration_bounds = array<i64: 1>, scalar_prefetch = 0 : i64, scratch_operands = 1 : i64, tpu.core_type = #tpu.core_type<tc>, window_params = [{transform_indices = @transform_0, window_bounds = array<i64: 3>}, {transform_indices = @transform_1, window_bounds = array<i64: 1>}, {transform_indices = @transform_2, window_bounds = array<i64: 8, 128>}, {pipeline_mode = #tpu.pipeline_mode<synchronous>, transform_indices = @transform_3, window_bounds = array<i64: 1, 1>}]} {
    %c0_i32 = arith.constant 0 : i32
    %0 = arith.cmpi eq, %arg0, %c0_i32 : i32
    %1 = arith.extui %0 : i1 to i32
    %c0_i32_0 = arith.constant 0 : i32
    %2 = arith.cmpi ne, %1, %c0_i32_0 : i32
    scf.if %2 {
      %cst_11 = arith.constant 0.000000e+00 : f32
      %36 = vector.broadcast %cst_11 : f32 to vector<1x1xf32>
      %c0_12 = arith.constant 0 : index
      %c0_13 = arith.constant 0 : index
      %37 = vector.load %arg5[%c0_12, %c0_13] : memref<1x1xf32, #tpu.memory_space<vmem>>, vector<1x1xf32>
      tpu.vector_store %arg5[%c0_12, %c0_13], %36 {strides = array<i32>} : memref<1x1xf32, #tpu.memory_space<vmem>>, vector<1x1xf32>,
    } else {
    }
    %c0 = arith.constant 0 : index
    %3 = memref.load %arg1[%c0] : memref<3xf32, #tpu.memory_space<smem>>
    %c1 = arith.constant 1 : index
    %4 = memref.load %arg1[%c1] : memref<3xf32, #tpu.memory_space<smem>>
    %c2 = arith.constant 2 : index
    %5 = memref.load %arg1[%c2] : memref<3xf32, #tpu.memory_space<smem>>
    %c0_1 = arith.constant 0 : index
    %6 = memref.load %arg2[%c0_1] : memref<1xi32, #tpu.memory_space<smem>>
    %7 = tpu.iota {dimensions = array<i32: 0>} : vector<8x128xi32>
    %8 = tpu.iota {dimensions = array<i32: 1>} : vector<8x128xi32>
    %c8_i32 = arith.constant 8 : i32
    %9 = arith.muli %arg0, %c8_i32 : i32
    %10 = vector.broadcast %9 : i32 to vector<8x128xi32>
    %11 = arith.addi %10, %7 : vector<8x128xi32>
    %c128_i32 = arith.constant 128 : i32
    %12 = vector.broadcast %c128_i32 : i32 to vector<8x128xi32>
    %13 = arith.muli %11, %12 : vector<8x128xi32>
    %14 = arith.addi %13, %8 : vector<8x128xi32>
    %c0_2 = arith.constant 0 : index
    %c0_3 = arith.constant 0 : index
    %15 = vector.load %arg3[%c0_2, %c0_3] : memref<8x128xf32, #tpu.memory_space<vmem>>, vector<8x128xf32>
    %16 = arith.mulf %15, %15 : vector<8x128xf32>
    %17 = vector.broadcast %3 : f32 to vector<8x128xf32>
    %18 = arith.mulf %16, %17 : vector<8x128xf32>
    %19 = vector.broadcast %4 : f32 to vector<8x128xf32>
    %20 = arith.subf %18, %19 : vector<8x128xf32>
    %c0_4 = arith.constant 0 : index
    %c0_5 = arith.constant 0 : index
    %21 = vector.load %arg5[%c0_4, %c0_5] : memref<1x1xf32, #tpu.memory_space<vmem>>, vector<1x1xf32>
    %22 = vector.broadcast %6 : i32 to vector<8x128xi32>
    %23 = arith.cmpi slt, %14, %22 : vector<8x128xi32>
    %cst = arith.constant 0.000000e+00 : f32
    %24 = vector.broadcast %cst : f32 to vector<8x128xf32>
    %25 = arith.select %23, %20, %24 : vector<8x128xi1>, vector<8x128xf32>
    %26 = vector.shape_cast %25 : vector<8x128xf32> to vector<1x8x128xf32>
    %cst_6 = arith.constant dense<0.000000e+00> : vector<1xf32>
    %27 = vector.multi_reduction <add>, %26, %cst_6 [1, 2] : vector<1x8x128xf32> to vector<1xf32>
    %28 = vector.shape_cast %27 : vector<1xf32> to vector<1x1x1xf32>
    %29 = vector.extract %28[0, 0, 0] : f32 from vector<1x1x1xf32>
    %30 = vector.broadcast %29 : f32 to vector<1x1xf32>
    %31 = arith.addf %21, %30 : vector<1x1xf32>
    %c0_7 = arith.constant 0 : index
    %c0_8 = arith.constant 0 : index
    %32 = vector.load %arg5[%c0_7, %c0_8] : memref<1x1xf32, #tpu.memory_space<vmem>>, vector<1x1xf32>
    tpu.vector_store %arg5[%c0_7, %c0_8], %31 {strides = array<i32>} : memref<1x1xf32, #tpu.memory_space<vmem>>, vector<1x1xf32>,
    %c0_i32_9 = arith.constant 0 : i32
    %33 = arith.cmpi eq, %arg0, %c0_i32_9 : i32
    %34 = arith.extui %33 : i1 to i32
    %c0_i32_10 = arith.constant 0 : i32
    %35 = arith.cmpi ne, %34, %c0_i32_10 : i32
    scf.if %35 {
      %c0_11 = arith.constant 0 : index
      %c0_12 = arith.constant 0 : index
      %36 = vector.load %arg5[%c0_11, %c0_12] : memref<1x1xf32, #tpu.memory_space<vmem>>, vector<1x1xf32>
      %37 = vector.broadcast %5 : f32 to vector<1x1xf32>
      %38 = arith.mulf %36, %37 : vector<1x1xf32>
      %cst_13 = arith.constant 0.000000e+00 : f32
      %39 = vector.broadcast %cst_13 : f32 to vector<1x1xf32>
      %40 = arith.subf %39, %38 : vector<1x1xf32>
      %c0_14 = arith.constant 0 : index
      %c0_15 = arith.constant 0 : index
      %41 = vector.load %arg4[%c0_14, %c0_15] : memref<1x1xf32, #tpu.memory_space<vmem>>, vector<1x1xf32>
      tpu.vector_store %arg4[%c0_14, %c0_15], %40 {strides = array<i32>} : memref<1x1xf32, #tpu.memory_space<vmem>>, vector<1x1xf32>,
    } else {
    }
    return
  }
  func.func @transform_0(%arg0: i32) -> i32 {
    %c0_i32 = arith.constant 0 : i32
    %c0_i32_0 = arith.constant 0 : i32
    return %c0_i32 : i32
  }
  func.func @transform_1(%arg0: i32) -> i32 {
    %c0_i32 = arith.constant 0 : i32
    %c0_i32_0 = arith.constant 0 : i32
    return %c0_i32 : i32
  }
  func.func @transform_2(%arg0: i32) -> (i32, i32) {
    %c0_i32 = arith.constant 0 : i32
    %c0_i32_0 = arith.constant 0 : i32
    return %arg0, %c0_i32 : i32, i32
  }
  func.func @transform_3(%arg0: i32) -> (i32, i32) {
    %c0_i32 = arith.constant 0 : i32
    %c0_i32_0 = arith.constant 0 : i32
    %c0_i32_1 = arith.constant 0 : i32
    return %c0_i32, %c0_i32_0 : i32, i32
  }
}

</mosaic_0001>

<llo_original>
// kernel: tpu_custom_call.1
$region0: #{tpu_custom_call.1}
  #allocation0 [shape = 'u32[]', space=smem, size = 0x4, offset = 0x4, fixed_abs, tag = 'smem constant byte address 0x4 - core index']
  #allocation1 [shape = 'u32[144,128]{1,0:T(1,128)}', space=vmem, size = 0x12000, scoped, tag = 'internal scratch']
  #allocation2 [shape = 'f32[1,1]{1,0:T(1,128)}', space=vmem, size = 0x200, scoped, tag = 'scratch operand']
  #allocation3 [shape = 's32[1]{0:T(128)S(6)}', space=smem, size = 0x200, scoped, tag = 'scoped memory for tpu_custom_call.1']
  %s0 = inlined_call_operand.vmem [shape: f32[3], index: 0, kind: input, shape index: {}]
  %s1 = inlined_call_operand.<no memory space> [shape: s32[1], index: 1, kind: input, shape index: {}]
  %s2 = inlined_call_operand.hbm [shape: f32[8,128], index: 2, kind: input, shape index: {}]
  %s3 = inlined_call_operand.hbm [shape: f32[1,1], index: 3, kind: output, shape index: {}]
  %s4 = sld [smem:[#allocation0]]
  $region38: #{tpu_custom_call.1} parent=0
    _
  %s6 = ssub.s32 1, %s4
  %s7 = scalar_select 0, %s6, %s4
  %8 = sst [smem:[#allocation3]] %s1
  $region1: #{tpu_custom_call.1} parent=0
    #allocation4 [shape = 'u8[512]{0}', space=smem, size = 0x200, scoped, tag = 'input window, operand 0, single buffered']
    #allocation5 [shape = 's32[1]{0}', space=sflag, size = 0x4, scoped, tag = 'scoped memory for tpu_custom_call.1']
    #allocation6 [shape = 's32[1]{0}', space=sflag, size = 0x4, scoped, tag = 'scoped memory for tpu_custom_call.1']
    #allocation7 [shape = 's32[1]{0}', space=sflag, size = 0x4, scoped, tag = 'scoped memory for tpu_custom_call.1']
    #allocation8 [shape = 'u8[4096]{0}', space=vmem, size = 0x1000, scoped, tag = 'input window, operand 2, single buffered']
    #allocation9 [shape = 'u8[512]{0}', space=vmem, size = 0x400, scoped, tag = 'output window, operand 0, single buffered']
    %9 = vsyncpa [#allocation7], 0
    %10 = vsyncpa [#allocation5], 0
    %11 = vsyncpa [#allocation6], 0
    // Predicated region
    $region2: #{tpu_custom_call.1} parent=1 // pred_check
      _
    $region3: #{tpu_custom_call.1} parent=1 // pred_check_branch
      %13 = sbr.rel (0) target = $region5
    $region4: #{tpu_custom_call.1} parent=1 // pred_region
      %s15 = ssub.s32 16, 16
      %16 = vsyncadd [#allocation7], %s15
      %s18 = sshll.u32 %s0, 4
      %s19 = int_to_ptr.vmem [resolvable:$true] %s18
      %21 = dma.vmem_to_smem %s19, 16, [#allocation4], [#allocation7]
    $region5: #{tpu_custom_call.1} parent=1 // pred_fallthru
      _
    // Predicated region
    $region6: #{tpu_custom_call.1} parent=1 // pred_check
      _
    $region7: #{tpu_custom_call.1} parent=1 // pred_check_branch
      %23 = sbr.rel (0) target = $region9
    $region8: #{tpu_custom_call.1} parent=1 // pred_region
      _
    $region9: #{tpu_custom_call.1} parent=1 // pred_fallthru
      _
    // Predicated region
    $region10: #{tpu_custom_call.1} parent=1 // pred_check
      _
    $region11: #{tpu_custom_call.1} parent=1 // pred_check_branch
      %25 = sbr.rel (0) target = $region13
    $region12: #{tpu_custom_call.1} parent=1 // pred_region
      %s27 = ssub.s32 128, 128
      %28 = vsyncadd [#allocation5], %s27
      %s30 = sshll.u32 [#allocation8], 4
      %s31 = int_to_ptr.vmem [resolvable:$true] %s30
      %33 = dma.hbm_to_vmem [thread:$0]  %s2, 128, %s31, [#allocation5]
    $region13: #{tpu_custom_call.1} parent=1 // pred_fallthru
      _
    // Predicated region
    $region14: #{tpu_custom_call.1} parent=1 // pred_check
      _
    $region15: #{tpu_custom_call.1} parent=1 // pred_check_branch
      %35 = sbr.rel (0) target = $region17
    $region16: #{tpu_custom_call.1} parent=1 // pred_region
      %36 = dma.done [#allocation7], 16
    $region17: #{tpu_custom_call.1} parent=1 // pred_fallthru
      _
    // Predicated region
    $region18: #{tpu_custom_call.1} parent=1 // pred_check
      _
    $region19: #{tpu_custom_call.1} parent=1 // pred_check_branch
      %38 = sbr.rel (0) target = $region21
    $region20: #{tpu_custom_call.1} parent=1 // pred_region
      %39 = dma.done [#allocation5], 128
    $region21: #{tpu_custom_call.1} parent=1 // pred_fallthru
      _
    %40 = sfence
    %p41 = scmp.eq.s32.totalorder 0, 0
    // Predicated region
    $region22: #{tpu_custom_call.1} parent=1 // pred_check
      %p42 = pneg %p41
    $region23: #{tpu_custom_call.1} parent=1 // pred_check_branch
      %44 = sbr.rel (%p42) target = $region25
    $region24: #{tpu_custom_call.1} parent=1 // pred_region
      %vm45 = vcmask 0
      %46 = vst.msk [vmem:[#allocation2] sm:$0x1] %vm45, 0.0
    $region25: #{tpu_custom_call.1} parent=1 // pred_fallthru
      _
    %s47 = sld [smem:[#allocation4]]
    %s48 = sld [smem:[#allocation4 + $0x1]]
    %s49 = sld [smem:[#allocation4 + $0x2]]
    %s50 = sld [smem:[#allocation3]]
    %v51 = vlaneseq
    %v52 = vshrl.u32 %v51, 7
    %v53 = vlaneseq
    %v54 = vand.u32 %v53, 127
    %s55 = smul.u32 0, 8
    %v56 = vstv %s55
    %v57 = vadd.s32 %v56, %v52
    %v58 = vmul.u32 %v57, 128
    %v59 = vadd.s32 %v58, %v54
    %v60 = vld [vmem:[#allocation8] sm:$0xff]
    %v61 = vmul.f32 %v60, %v60
    %v62 = vstv %s47
    %v63 = vmul.f32 %v61, %v62
    %v64 = vstv %s48
    %v65 = vsub.f32 %v63, %v64
    %v66 = vld [vmem:[#allocation2] sm:$0x1]
    %v67 = vstv %s50
    %vm68 = vcmp.lt.s32.totalorder %v59, %v67
    %v69 = vsel %vm68, %v65, 0.0
    %70 = vadd.xlane.f32.xlu0 %v69
    %v71 = vpop.xlane.xlu0 %70
    %v72 = vrot.slane %v71, 4
    %v73 = vadd.f32 %v71, %v72
    %v74 = vrot.slane %v73, 2
    %v75 = vadd.f32 %v73, %v74
    %v76 = vrot.slane %v75, 1
    %v77 = vadd.f32 %v75, %v76
    %s78 = vtos %v77
    %v79 = vstv %s78
    %v80 = vadd.f32 %v66, %v79
    %vm81 = vcmask 0
    %82 = vst.msk [vmem:[#allocation2] sm:$0x1] %vm81, %v80
    // Predicated region
    $region26: #{tpu_custom_call.1} parent=1 // pred_check
      %p83 = pneg %p41
    $region27: #{tpu_custom_call.1} parent=1 // pred_check_branch
      %85 = sbr.rel (%p83) target = $region29
    $region28: #{tpu_custom_call.1} parent=1 // pred_region
      %v86 = vld [vmem:[#allocation2] sm:$0x1]
      %v87 = vstv %s49
      %v88 = vmul.f32 %v86, %v87
      %v89 = vsub.f32 0.0, %v88
      %90 = vst.msk [vmem:[#allocation9] sm:$0x1] %vm81, %v89
    $region29: #{tpu_custom_call.1} parent=1 // pred_fallthru
      _
    // Predicated region
    $region30: #{tpu_custom_call.1} parent=1 // pred_check
      _
    $region31: #{tpu_custom_call.1} parent=1 // pred_check_branch
      %92 = sbr.rel (0) target = $region33
    $region32: #{tpu_custom_call.1} parent=1 // pred_region
      %s94 = ssub.s32 16, 16
      %95 = vsyncadd [#allocation6], %s94
      %s97 = sshll.u32 [#allocation9], 4
      %s98 = int_to_ptr.vmem [resolvable:$true] %s97
      %100 = dma.vmem_to_hbm [thread:$0]  %s98, 16, %s3, [#allocation6]
    $region33: #{tpu_custom_call.1} parent=1 // pred_fallthru
      _
    // Predicated region
    $region34: #{tpu_custom_call.1} parent=1 // pred_check
      _
    $region35: #{tpu_custom_call.1} parent=1 // pred_check_branch
      %102 = sbr.rel (0) target = $region37
    $region36: #{tpu_custom_call.1} parent=1 // pred_region
      %103 = dma.done [#allocation6], 16
    $region37: #{tpu_custom_call.1} parent=1 // pred_fallthru
      _
    %104 = vsyncpa [#allocation5], 1
    %105 = vsyncpa [#allocation6], 1
    %106 = vsyncpa [#allocation7], 1

</llo_original>
